<compile_context>
chip_gen: v5e
topology: v5e:2x2
jax: 0.10.0
libtpu: 0.0.40
codegen_flags: <defaults>
</compile_context>

<pallas_src>
import functools

import jax
import jax.numpy as jnp
from jax import lax
from jax.experimental import pallas as pl
from jax.experimental.pallas import tpu as pltpu


_TILE_N = 256                    # node tile (rows / reduction), mult. of 8 and 128
_LANE = 128                      # feature dims padded to lane multiples
_VMEM_LIMIT = 48 * 1024 * 1024   # fits v7x's 64 MiB physical VMEM with headroom


def _round_up(x, m):
    return ((x + m - 1) // m) * m


def _pad2(a, rows, cols):
    return jnp.pad(a, ((0, rows - a.shape[0]), (0, cols - a.shape[1])))


# ----------------------------------------------------------------------------
# Kernel 1: support = act(feat @ W), tiled over node-row blocks (W resident).
# ----------------------------------------------------------------------------
def _support_kernel(feat_ref, w_ref, out_ref, *, active):
    s = jnp.dot(feat_ref[...], w_ref[...], preferred_element_type=jnp.float32)
    if active:
        s = jnp.tanh(s)
    out_ref[...] = s.astype(out_ref.dtype)


def _support(feat, w, active, tm):
    np_, f_in = feat.shape
    f_out = w.shape[1]
    return pl.pallas_call(
        functools.partial(_support_kernel, active=active),
        out_shape=jax.ShapeDtypeStruct((np_, f_out), jnp.float32),
        grid_spec=pltpu.PrefetchScalarGridSpec(
            num_scalar_prefetch=0,
            grid=(np_ // tm,),
            in_specs=[
                pl.BlockSpec((tm, f_in), lambda i: (i, 0)),
                pl.BlockSpec((f_in, f_out), lambda i: (0, 0)),
            ],
            out_specs=pl.BlockSpec((tm, f_out), lambda i: (i, 0)),
        ),
        compiler_params=pltpu.CompilerParams(
            dimension_semantics=("parallel",),
            vmem_limit_bytes=_VMEM_LIMIT,
        ),
        cost_estimate=pl.CostEstimate(
            flops=2 * np_ * f_in * f_out,
            transcendentals=(np_ * f_out) if active else 0,
            bytes_accessed=4 * (np_ * f_in + f_in * f_out + np_ * f_out),
        ),
    )(feat, w)


# ----------------------------------------------------------------------------
# Kernel 2: out = adj @ support, tiled (rows x K-reduction) with VMEM accumulator.
# ----------------------------------------------------------------------------
def _aggregate_kernel(adj_ref, sup_ref, out_ref, acc_ref):
    @pl.when(pl.program_id(1) == 0)
    def _():
        acc_ref[...] = jnp.zeros_like(acc_ref)

    acc_ref[...] += jnp.dot(adj_ref[...], sup_ref[...],
                            preferred_element_type=jnp.float32)

    @pl.when(pl.program_id(1) == pl.num_programs(1) - 1)
    def _():
        out_ref[...] = acc_ref[...].astype(out_ref.dtype)


def _aggregate(adj, support, tm, tk):
    np_ = adj.shape[0]
    f_out = support.shape[1]
    n_row_tiles = np_ // tm
    return pl.pallas_call(
        _aggregate_kernel,
        out_shape=jax.ShapeDtypeStruct((np_, f_out), jnp.float32),
        grid_spec=pltpu.PrefetchScalarGridSpec(
            num_scalar_prefetch=0,
            grid=(n_row_tiles, np_ // tk),
            in_specs=[
                pl.BlockSpec((tm, tk), lambda i, k: (i, k)),
                pl.BlockSpec((tk, f_out), lambda i, k: (k, 0)),
            ],
            out_specs=pl.BlockSpec((tm, f_out), lambda i, k: (i, 0)),
            scratch_shapes=[pltpu.VMEM((tm, f_out), jnp.float32)],
        ),
        compiler_params=pltpu.CompilerParams(
            dimension_semantics=("parallel", "arbitrary"),
            vmem_limit_bytes=_VMEM_LIMIT,
        ),
        cost_estimate=pl.CostEstimate(
            flops=2 * np_ * np_ * f_out,
            transcendentals=0,
            bytes_accessed=4 * (np_ * np_ + n_row_tiles * np_ * f_out + np_ * f_out),
        ),
    )(adj, support)


# ----------------------------------------------------------------------------
# Kernel 3: adj_hat tile (i, j) = sigmoid(z_igae_i . z_igae_j) + sigmoid(z_hat_i . z_hat_j)
# No full N x N intermediates; grams via dot_general (contract last dims, no .T).
# ----------------------------------------------------------------------------
def _adj_hat_kernel(zi_i_ref, zh_i_ref, zi_j_ref, zh_j_ref, out_ref):
    dn = (((1,), (1,)), ((), ()))
    g1 = lax.dot_general(zi_i_ref[...], zi_j_ref[...], dimension_numbers=dn,
                         preferred_element_type=jnp.float32)
    g2 = lax.dot_general(zh_i_ref[...], zh_j_ref[...], dimension_numbers=dn,
                         preferred_element_type=jnp.float32)
    out_ref[...] = jax.nn.sigmoid(g1) + jax.nn.sigmoid(g2)


def _adj_hat(z_igae, z_hat, tm, tn):
    np_, f3 = z_igae.shape
    fh = z_hat.shape[1]
    return pl.pallas_call(
        _adj_hat_kernel,
        out_shape=jax.ShapeDtypeStruct((np_, np_), jnp.float32),
        grid_spec=pltpu.PrefetchScalarGridSpec(
            num_scalar_prefetch=0,
            grid=(np_ // tm, np_ // tn),
            in_specs=[
                pl.BlockSpec((tm, f3), lambda i, j: (i, 0)),
                pl.BlockSpec((tm, fh), lambda i, j: (i, 0)),
                pl.BlockSpec((tn, f3), lambda i, j: (j, 0)),
                pl.BlockSpec((tn, fh), lambda i, j: (j, 0)),
            ],
            out_specs=pl.BlockSpec((tm, tn), lambda i, j: (i, j)),
        ),
        compiler_params=pltpu.CompilerParams(
            dimension_semantics=("parallel", "parallel"),
            vmem_limit_bytes=_VMEM_LIMIT,
        ),
        cost_estimate=pl.CostEstimate(
            flops=2 * np_ * np_ * (f3 + fh),
            transcendentals=2 * np_ * np_,
            bytes_accessed=4 * (np_ * np_ + 2 * np_ * (f3 + fh)),
        ),
    )(z_igae, z_hat, z_igae, z_hat)


# ----------------------------------------------------------------------------
# Full IGAE forward
# ----------------------------------------------------------------------------
def igae_forward(x, adj, weights, *, tile_n=_TILE_N):
    """x: [N, n_input], adj: [N, N], weights: 6 (in, out) f32 matrices."""
    n = x.shape[0]
    np_ = _round_up(n, tile_n)

    # Zero-pad node dim to the row tile and every feature dim to the lane width.
    # Exact: tanh(0 @ W)=0, zero W pad rows/cols and zero adj pad rows/cols
    # contribute nothing, so padded rows/cols stay zero through every layer.
    wp = [_pad2(w, _round_up(w.shape[0], _LANE), _round_up(w.shape[1], _LANE))
          for w in weights]
    xp = _pad2(x, np_, wp[0].shape[0])
    adjp = _pad2(adj, np_, np_)

    def gnn(feat, w, active):
        sup = _support(feat, w, active, tile_n)
        return _aggregate(adjp, sup, tile_n, tile_n)

    # encoder
    z = gnn(xp, wp[0], True)
    z = gnn(z, wp[1], True)
    z_igae = gnn(z, wp[2], False)

    # decoder
    z = gnn(z_igae, wp[3], True)
    z = gnn(z, wp[4], True)
    z_hat = gnn(z, wp[5], True)

    adj_hat = _adj_hat(z_igae, z_hat, tile_n, tile_n)

    f3 = weights[2].shape[1]
    f6 = weights[5].shape[1]
    return z_igae[:n, :f3], z_hat[:n, :f6], adj_hat[:n, :n]


# ----------------------------------------------------------------------------
# Deterministic parameter init (xavier_uniform, as in the PyTorch module)
# ----------------------------------------------------------------------------
def xavier_uniform(key, fan_in, fan_out):
    bound = jnp.sqrt(6.0 / (fan_in + fan_out))
    return jax.random.uniform(key, (fan_in, fan_out), jnp.float32,
                              minval=-bound, maxval=bound)


# ----------------------------------------------------------------------------
# Pure-JAX reference (mirrors the PyTorch forward exactly, name='acm')
# ----------------------------------------------------------------------------
def igae_reference(x, adj, weights):
    w1, w2, w3, w4, w5, w6 = weights

    def gnn(feat, w, active):
        s = feat @ w
        if active:
            s = jnp.tanh(s)
        return adj @ s

    z = gnn(x, w1, True)
    z = gnn(z, w2, True)
    z_igae = gnn(z, w3, False)
    z_igae_adj = jax.nn.sigmoid(z_igae @ z_igae.T)
    z = gnn(z_igae, w4, True)
    z = gnn(z, w5, True)
    z_hat = gnn(z, w6, True)
    z_hat_adj = jax.nn.sigmoid(z_hat @ z_hat.T)
    return z_igae, z_hat, z_igae_adj + z_hat_adj


if __name__ == "__main__":
    # small demo shapes: N=16 nodes, n_input=32, enc 32->16->8, dec 8->16->32
    N = 16
    n_input = 32
    gae_n_enc_1, gae_n_enc_2, gae_n_enc_3 = 32, 16, 8
    gae_n_dec_1, gae_n_dec_2, gae_n_dec_3 = 8, 16, 32

    key = jax.random.PRNGKey(0)
    keys = jax.random.split(key, 8)

    x = jax.random.normal(keys[0], (N, n_input), jnp.float32)
    adj_raw = jax.random.uniform(keys[1], (N, N), jnp.float32)
    adj = adj_raw / jnp.sum(adj_raw, axis=1, keepdims=True)

    weights = (
        xavier_uniform(keys[2], n_input, gae_n_enc_1),
        xavier_uniform(keys[3], gae_n_enc_1, gae_n_enc_2),
        xavier_uniform(keys[4], gae_n_enc_2, gae_n_enc_3),
        xavier_uniform(keys[5], gae_n_dec_1, gae_n_dec_2),
        xavier_uniform(keys[6], gae_n_dec_2, gae_n_dec_3),
        xavier_uniform(keys[7], gae_n_dec_3, n_input),
    )

    z_igae, z_hat, adj_hat = igae_forward(x, adj, weights)
    jax.block_until_ready((z_igae, z_hat, adj_hat))

    # correctness check against pure-JAX reference
    r_z_igae, r_z_hat, r_adj_hat = igae_reference(x, adj, weights)
    assert z_igae.shape == r_z_igae.shape
    assert z_hat.shape == r_z_hat.shape
    assert adj_hat.shape == r_adj_hat.shape
    assert jnp.allclose(z_igae, r_z_igae, atol=1e-4, rtol=1e-4)
    assert jnp.allclose(z_hat, r_z_hat, atol=1e-4, rtol=1e-4)
    assert jnp.allclose(adj_hat, r_adj_hat, atol=1e-4, rtol=1e-4)

    print("KERNEL_OK")
</pallas_src>

<mosaic_0001>
module attributes {stable_mosaic.version = 11 : i64} {
  func.func @_support_kernel(%arg0: i32, %arg1: memref<256x128xf32, #tpu.memory_space<vmem>>, %arg2: memref<128x128xf32, #tpu.memory_space<vmem>>, %arg3: memref<256x128xf32, #tpu.memory_space<vmem>>) attributes {dimension_semantics = [#tpu.dimension_semantics<parallel>], iteration_bounds = array<i64: 1>, scalar_prefetch = 0 : i64, scratch_operands = 0 : i64, tpu.core_type = #tpu.core_type<tc>, window_params = [{transform_indices = @transform_0, window_bounds = array<i64: 256, 128>}, {pipeline_mode = #tpu.pipeline_mode<synchronous>, transform_indices = @transform_1, window_bounds = array<i64: 128, 128>}, {transform_indices = @transform_2, window_bounds = array<i64: 256, 128>}]} {
    %c0 = arith.constant 0 : index
    %c0_0 = arith.constant 0 : index
    %0 = vector.load %arg1[%c0, %c0_0] : memref<256x128xf32, #tpu.memory_space<vmem>>, vector<256x128xf32>
    %c0_1 = arith.constant 0 : index
    %c0_2 = arith.constant 0 : index
    %1 = vector.load %arg2[%c0_1, %c0_2] : memref<128x128xf32, #tpu.memory_space<vmem>>, vector<128x128xf32>
    %cst = arith.constant dense<0.000000e+00> : vector<256x128xf32>
    %2 = tpu.matmul %0, %1, %cst {dimension_numbers = #tpu.dot_dimension_numbers<[1], [0], [0], [1], [0, 0, 1, 1], [], []>} : vector<256x128xf32>, vector<128x128xf32>, vector<256x128xf32> -> vector<256x128xf32>
    %3 = math.tanh %2 : vector<256x128xf32>
    %c0_3 = arith.constant 0 : index
    %c0_4 = arith.constant 0 : index
    %4 = vector.load %arg3[%c0_3, %c0_4] : memref<256x128xf32, #tpu.memory_space<vmem>>, vector<256x128xf32>
    tpu.vector_store %arg3[%c0_3, %c0_4], %3 {strides = array<i32>} : memref<256x128xf32, #tpu.memory_space<vmem>>, vector<256x128xf32>,
    return
  }
  func.func @transform_0(%arg0: i32) -> (i32, i32) {
    %c0_i32 = arith.constant 0 : i32
    %c0_i32_0 = arith.constant 0 : i32
    return %arg0, %c0_i32 : i32, i32
  }
  func.func @transform_1(%arg0: i32) -> (i32, i32) {
    %c0_i32 = arith.constant 0 : i32
    %c0_i32_0 = arith.constant 0 : i32
    %c0_i32_1 = arith.constant 0 : i32
    return %c0_i32, %c0_i32_0 : i32, i32
  }
  func.func @transform_2(%arg0: i32) -> (i32, i32) {
    %c0_i32 = arith.constant 0 : i32
    %c0_i32_0 = arith.constant 0 : i32
    return %arg0, %c0_i32 : i32, i32
  }
}

</mosaic_0001>

<llo_original>
// kernel: tpu_custom_call.1
$region0: #{tpu_custom_call.1}
  #allocation0 [shape = 'u32[]', space=smem, size = 0x4, offset = 0x4, fixed_abs, tag = 'smem constant byte address 0x4 - core index']
  #allocation1 [shape = 'u32[72,128]{1,0:T(1,128)}', space=vmem, size = 0x9000, scoped, tag = 'internal scratch']
  %s0 = inlined_call_operand.hbm [shape: f32[256,128], index: 0, kind: input, shape index: {}]
  %s1 = inlined_call_operand.hbm [shape: f32[128,128], index: 1, kind: input, shape index: {}]
  %s2 = inlined_call_operand.hbm [shape: f32[256,128], index: 2, kind: output, shape index: {}]
  %s3 = sld [smem:[#allocation0]]
  $region26: #{tpu_custom_call.1} parent=0
    _
  %s5 = ssub.s32 1, %s3
  %s6 = scalar_select 0, %s5, %s3
  $region1: #{tpu_custom_call.1} parent=0
    #allocation2 [shape = 'u8[131072]{0}', space=vmem, size = 0x20000, scoped, tag = 'input window, operand 0, single buffered']
    #allocation3 [shape = 's32[1]{0}', space=sflag, size = 0x4, scoped, tag = 'scoped memory for tpu_custom_call.1']
    #allocation4 [shape = 's32[1]{0}', space=sflag, size = 0x4, scoped, tag = 'scoped memory for tpu_custom_call.1']
    #allocation5 [shape = 'u8[65536]{0}', space=vmem, size = 0x10000, scoped, tag = 'input window, operand 1, single buffered']
    #allocation6 [shape = 's32[1]{0}', space=sflag, size = 0x4, scoped, tag = 'scoped memory for tpu_custom_call.1']
    #allocation7 [shape = 'u8[131072]{0}', space=vmem, size = 0x20000, scoped, tag = 'output window, operand 0, single buffered']
    %7 = vsyncpa [#allocation3], 0
    %8 = vsyncpa [#allocation6], 0
    %9 = vsyncpa [#allocation4], 0
    // Predicated region
    $region2: #{tpu_custom_call.1} parent=1 // pred_check
      _
    $region3: #{tpu_custom_call.1} parent=1 // pred_check_branch
      %11 = sbr.rel (0) target = $region5
    $region4: #{tpu_custom_call.1} parent=1 // pred_region
      %13 = vsyncadd [#allocation3], 0
      %s14 = sshll.u32 %s0, 4
      %s15 = int_to_ptr.hbm [resolvable:$true] %s14
      %s16 = sshll.u32 [#allocation2], 4
      %s17 = int_to_ptr.vmem [resolvable:$true] %s16
      %22 = dma.hbm_to_vmem [thread:$0]  %s15, 4096, %s17, [#allocation3], 128, 128, 8
    $region5: #{tpu_custom_call.1} parent=1 // pred_fallthru
      _
    // Predicated region
    $region6: #{tpu_custom_call.1} parent=1 // pred_check
      _
    $region7: #{tpu_custom_call.1} parent=1 // pred_check_branch
      %24 = sbr.rel (0) target = $region9
    $region8: #{tpu_custom_call.1} parent=1 // pred_region
      %26 = vsyncadd [#allocation6], 0
      %s27 = sshll.u32 %s1, 4
      %s28 = int_to_ptr.hbm [resolvable:$true] %s27
      %s29 = sshll.u32 [#allocation5], 4
      %s30 = int_to_ptr.vmem [resolvable:$true] %s29
      %35 = dma.hbm_to_vmem [thread:$0]  %s28, 2048, %s30, [#allocation6], 128, 128, 8
    $region9: #{tpu_custom_call.1} parent=1 // pred_fallthru
      _
    // Predicated region
    $region10: #{tpu_custom_call.1} parent=1 // pred_check
      _
    $region11: #{tpu_custom_call.1} parent=1 // pred_check_branch
      %37 = sbr.rel (0) target = $region13
    $region12: #{tpu_custom_call.1} parent=1 // pred_region
      %39 = dma.done [#allocation3], 4096
    $region13: #{tpu_custom_call.1} parent=1 // pred_fallthru
      _
    // Predicated region
    $region14: #{tpu_custom_call.1} parent=1 // pred_check
      _
    $region15: #{tpu_custom_call.1} parent=1 // pred_check_branch
      %41 = sbr.rel (0) target = $region17
    $region16: #{tpu_custom_call.1} parent=1 // pred_region
      %43 = dma.done [#allocation6], 2048
    $region17: #{tpu_custom_call.1} parent=1 // pred_fallthru
      _
    %v44 = vld [vmem:[#allocation2] sm:$0xff]
    %v45 = vld [vmem:[#allocation2 + $0x8] sm:$0xff]
    %v46 = vld [vmem:[#allocation2 + $0x10] sm:$0xff]
    %v47 = vld [vmem:[#allocation2 + $0x18] sm:$0xff]
    %v48 = vld [vmem:[#allocation2 + $0x20] sm:$0xff]
    %v49 = vld [vmem:[#allocation2 + $0x28] sm:$0xff]
    %v50 = vld [vmem:[#allocation2 + $0x30] sm:$0xff]
    %v51 = vld [vmem:[#allocation2 + $0x38] sm:$0xff]
    %v52 = vld [vmem:[#allocation2 + $0x40] sm:$0xff]
    %v53 = vld [vmem:[#allocation2 + $0x48] sm:$0xff]
    %v54 = vld [vmem:[#allocation2 + $0x50] sm:$0xff]
    %v55 = vld [vmem:[#allocation2 + $0x58] sm:$0xff]
    %v56 = vld [vmem:[#allocation2 + $0x60] sm:$0xff]
    %v57 = vld [vmem:[#allocation2 + $0x68] sm:$0xff]
    %v58 = vld [vmem:[#allocation2 + $0x70] sm:$0xff]
    %v59 = vld [vmem:[#allocation2 + $0x78] sm:$0xff]
    %v60 = vld [vmem:[#allocation2 + $0x80] sm:$0xff]
    %v61 = vld [vmem:[#allocation2 + $0x88] sm:$0xff]
    %v62 = vld [vmem:[#allocation2 + $0x90] sm:$0xff]
    %v63 = vld [vmem:[#allocation2 + $0x98] sm:$0xff]
    %v64 = vld [vmem:[#allocation2 + $0xa0] sm:$0xff]
    %v65 = vld [vmem:[#allocation2 + $0xa8] sm:$0xff]
    %v66 = vld [vmem:[#allocation2 + $0xb0] sm:$0xff]
    %v67 = vld [vmem:[#allocation2 + $0xb8] sm:$0xff]
    %v68 = vld [vmem:[#allocation2 + $0xc0] sm:$0xff]
    %v69 = vld [vmem:[#allocation2 + $0xc8] sm:$0xff]
    %v70 = vld [vmem:[#allocation2 + $0xd0] sm:$0xff]
    %v71 = vld [vmem:[#allocation2 + $0xd8] sm:$0xff]
    %v72 = vld [vmem:[#allocation2 + $0xe0] sm:$0xff]
    %v73 = vld [vmem:[#allocation2 + $0xe8] sm:$0xff]
    %v74 = vld [vmem:[#allocation2 + $0xf0] sm:$0xff]
    %v75 = vld [vmem:[#allocation2 + $0xf8] sm:$0xff]
    %v76 = vld [vmem:[#allocation5] sm:$0xff]
    %v77 = vld [vmem:[#allocation5 + $0x8] sm:$0xff]
    %v78 = vld [vmem:[#allocation5 + $0x10] sm:$0xff]
    %v79 = vld [vmem:[#allocation5 + $0x18] sm:$0xff]
    %v80 = vld [vmem:[#allocation5 + $0x20] sm:$0xff]
    %v81 = vld [vmem:[#allocation5 + $0x28] sm:$0xff]
    %v82 = vld [vmem:[#allocation5 + $0x30] sm:$0xff]
    %v83 = vld [vmem:[#allocation5 + $0x38] sm:$0xff]
    %v84 = vld [vmem:[#allocation5 + $0x40] sm:$0xff]
    %v85 = vld [vmem:[#allocation5 + $0x48] sm:$0xff]
    %v86 = vld [vmem:[#allocation5 + $0x50] sm:$0xff]
    %v87 = vld [vmem:[#allocation5 + $0x58] sm:$0xff]
    %v88 = vld [vmem:[#allocation5 + $0x60] sm:$0xff]
    %v89 = vld [vmem:[#allocation5 + $0x68] sm:$0xff]
    %v90 = vld [vmem:[#allocation5 + $0x70] sm:$0xff]
    %v91 = vld [vmem:[#allocation5 + $0x78] sm:$0xff]
    %92 = vmatpush.msra.mxu0 %v91
    %93 = vmatpush.msra.mxu0 %v90
    %94 = vmatpush.msra.mxu0 %v89
    %95 = vmatpush.msra.mxu0 %v88
    %96 = vmatpush.msra.mxu0 %v87
    %97 = vmatpush.msra.mxu0 %v86
    %98 = vmatpush.msra.mxu0 %v85
    %99 = vmatpush.msra.mxu0 %v84
    %100 = vmatpush.msra.mxu0 %v83
    %101 = vmatpush.msra.mxu0 %v82
    %102 = vmatpush.msra.mxu0 %v81
    %103 = vmatpush.msra.mxu0 %v80
    %104 = vmatpush.msra.mxu0 %v79
    %105 = vmatpush.msra.mxu0 %v78
    %106 = vmatpush.msra.mxu0 %v77
    %107 = vmatpush.msra.mxu0 %v76
    %108 = vmatmul.f32.gmra.mxu0 %v44
    %v109 = vpop.f32.mrf.mxu0
    %v110 = vadd.f32 0.0, %v109
    %111 = vmatmul.f32.gmra.mxu0 %v45
    %v112 = vpop.f32.mrf.mxu0
    %v113 = vadd.f32 0.0, %v112
    %114 = vmatmul.f32.gmra.mxu0 %v46
    %v115 = vpop.f32.mrf.mxu0
    %v116 = vadd.f32 0.0, %v115
    %117 = vmatmul.f32.gmra.mxu0 %v47
    %v118 = vpop.f32.mrf.mxu0
    %v119 = vadd.f32 0.0, %v118
    %120 = vmatmul.f32.gmra.mxu0 %v48
    %v121 = vpop.f32.mrf.mxu0
    %v122 = vadd.f32 0.0, %v121
    %123 = vmatmul.f32.gmra.mxu0 %v49
    %v124 = vpop.f32.mrf.mxu0
    %v125 = vadd.f32 0.0, %v124
    %126 = vmatmul.f32.gmra.mxu0 %v50
    %v127 = vpop.f32.mrf.mxu0
    %v128 = vadd.f32 0.0, %v127
    %129 = vmatmul.f32.gmra.mxu0 %v51
    %v130 = vpop.f32.mrf.mxu0
    %v131 = vadd.f32 0.0, %v130
    %132 = vmatmul.f32.gmra.mxu0 %v52
    %v133 = vpop.f32.mrf.mxu0
    %v134 = vadd.f32 0.0, %v133
    %135 = vmatmul.f32.gmra.mxu0 %v53
    %v136 = vpop.f32.mrf.mxu0
    %v137 = vadd.f32 0.0, %v136
    %138 = vmatmul.f32.gmra.mxu0 %v54
    %v139 = vpop.f32.mrf.mxu0
    %v140 = vadd.f32 0.0, %v139
    %141 = vmatmul.f32.gmra.mxu0 %v55
    %v142 = vpop.f32.mrf.mxu0
    %v143 = vadd.f32 0.0, %v142
    %144 = vmatmul.f32.gmra.mxu0 %v56
    %v145 = vpop.f32.mrf.mxu0
    %v146 = vadd.f32 0.0, %v145
    %147 = vmatmul.f32.gmra.mxu0 %v57
    %v148 = vpop.f32.mrf.mxu0
    %v149 = vadd.f32 0.0, %v148
    %150 = vmatmul.f32.gmra.mxu0 %v58
    %v151 = vpop.f32.mrf.mxu0
    %v152 = vadd.f32 0.0, %v151
    %153 = vmatmul.f32.gmra.mxu0 %v59
    %v154 = vpop.f32.mrf.mxu0
    %v155 = vadd.f32 0.0, %v154
    %156 = vmatmul.f32.gmra.mxu0 %v60
    %v157 = vpop.f32.mrf.mxu0
    %v158 = vadd.f32 0.0, %v157
    %159 = vmatmul.f32.gmra.mxu0 %v61
    %v160 = vpop.f32.mrf.mxu0
    %v161 = vadd.f32 0.0, %v160
    %162 = vmatmul.f32.gmra.mxu0 %v62
    %v163 = vpop.f32.mrf.mxu0
    %v164 = vadd.f32 0.0, %v163
    %165 = vmatmul.f32.gmra.mxu0 %v63
    %v166 = vpop.f32.mrf.mxu0
    %v167 = vadd.f32 0.0, %v166
    %168 = vmatmul.f32.gmra.mxu0 %v64
    %v169 = vpop.f32.mrf.mxu0
    %v170 = vadd.f32 0.0, %v169
    %171 = vmatmul.f32.gmra.mxu0 %v65
    %v172 = vpop.f32.mrf.mxu0
    %v173 = vadd.f32 0.0, %v172
    %174 = vmatmul.f32.gmra.mxu0 %v66
    %v175 = vpop.f32.mrf.mxu0
    %v176 = vadd.f32 0.0, %v175
    %177 = vmatmul.f32.gmra.mxu0 %v67
    %v178 = vpop.f32.mrf.mxu0
    %v179 = vadd.f32 0.0, %v178
    %180 = vmatmul.f32.gmra.mxu0 %v68
    %v181 = vpop.f32.mrf.mxu0
    %v182 = vadd.f32 0.0, %v181
    %183 = vmatmul.f32.gmra.mxu0 %v69
    %v184 = vpop.f32.mrf.mxu0
    %v185 = vadd.f32 0.0, %v184
    %186 = vmatmul.f32.gmra.mxu0 %v70
    %v187 = vpop.f32.mrf.mxu0
    %v188 = vadd.f32 0.0, %v187
    %189 = vmatmul.f32.gmra.mxu0 %v71
    %v190 = vpop.f32.mrf.mxu0
    %v191 = vadd.f32 0.0, %v190
    %192 = vmatmul.f32.gmra.mxu0 %v72
    %v193 = vpop.f32.mrf.mxu0
    %v194 = vadd.f32 0.0, %v193
    %195 = vmatmul.f32.gmra.mxu0 %v73
    %v196 = vpop.f32.mrf.mxu0
    %v197 = vadd.f32 0.0, %v196
    %198 = vmatmul.f32.gmra.mxu0 %v74
    %v199 = vpop.f32.mrf.mxu0
    %v200 = vadd.f32 0.0, %v199
    %201 = vmatmul.f32.gmra.mxu0 %v75
    %v202 = vpop.f32.mrf.mxu0
    %v203 = vadd.f32 0.0, %v202
    %204 = vdwg.mxu0
    %v205 = vtanh.pop %v110
    %v206 = vtanh.pop %v113
    %v207 = vtanh.pop %v116
    %v208 = vtanh.pop %v119
    %v209 = vtanh.pop %v122
    %v210 = vtanh.pop %v125
    %v211 = vtanh.pop %v128
    %v212 = vtanh.pop %v131
    %v213 = vtanh.pop %v134
    %v214 = vtanh.pop %v137
    %v215 = vtanh.pop %v140
    %v216 = vtanh.pop %v143
    %v217 = vtanh.pop %v146
    %v218 = vtanh.pop %v149
    %v219 = vtanh.pop %v152
    %v220 = vtanh.pop %v155
    %v221 = vtanh.pop %v158
    %v222 = vtanh.pop %v161
    %v223 = vtanh.pop %v164
    %v224 = vtanh.pop %v167
    %v225 = vtanh.pop %v170
    %v226 = vtanh.pop %v173
    %v227 = vtanh.pop %v176
    %v228 = vtanh.pop %v179
    %v229 = vtanh.pop %v182
    %v230 = vtanh.pop %v185
    %v231 = vtanh.pop %v188
    %v232 = vtanh.pop %v191
    %v233 = vtanh.pop %v194
    %v234 = vtanh.pop %v197
    %v235 = vtanh.pop %v200
    %v236 = vtanh.pop %v203
    %237 = vst [vmem:[#allocation7] sm:$0xff] %v205
    %238 = vst [vmem:[#allocation7 + $0x8] sm:$0xff] %v206
    %239 = vst [vmem:[#allocation7 + $0x10] sm:$0xff] %v207
    %240 = vst [vmem:[#allocation7 + $0x18] sm:$0xff] %v208
    %241 = vst [vmem:[#allocation7 + $0x20] sm:$0xff] %v209
    %242 = vst [vmem:[#allocation7 + $0x28] sm:$0xff] %v210
    %243 = vst [vmem:[#allocation7 + $0x30] sm:$0xff] %v211
    %244 = vst [vmem:[#allocation7 + $0x38] sm:$0xff] %v212
    %245 = vst [vmem:[#allocation7 + $0x40] sm:$0xff] %v213
    %246 = vst [vmem:[#allocation7 + $0x48] sm:$0xff] %v214
    %247 = vst [vmem:[#allocation7 + $0x50] sm:$0xff] %v215
    %248 = vst [vmem:[#allocation7 + $0x58] sm:$0xff] %v216
    %249 = vst [vmem:[#allocation7 + $0x60] sm:$0xff] %v217
    %250 = vst [vmem:[#allocation7 + $0x68] sm:$0xff] %v218
    %251 = vst [vmem:[#allocation7 + $0x70] sm:$0xff] %v219
    %252 = vst [vmem:[#allocation7 + $0x78] sm:$0xff] %v220
    %253 = vst [vmem:[#allocation7 + $0x80] sm:$0xff] %v221
    %254 = vst [vmem:[#allocation7 + $0x88] sm:$0xff] %v222
    %255 = vst [vmem:[#allocation7 + $0x90] sm:$0xff] %v223
    %256 = vst [vmem:[#allocation7 + $0x98] sm:$0xff] %v224
    %257 = vst [vmem:[#allocation7 + $0xa0] sm:$0xff] %v225
    %258 = vst [vmem:[#allocation7 + $0xa8] sm:$0xff] %v226
    %259 = vst [vmem:[#allocation7 + $0xb0] sm:$0xff] %v227
    %260 = vst [vmem:[#allocation7 + $0xb8] sm:$0xff] %v228
    %261 = vst [vmem:[#allocation7 + $0xc0] sm:$0xff] %v229
    %262 = vst [vmem:[#allocation7 + $0xc8] sm:$0xff] %v230
    %263 = vst [vmem:[#allocation7 + $0xd0] sm:$0xff] %v231
    %264 = vst [vmem:[#allocation7 + $0xd8] sm:$0xff] %v232
    %265 = vst [vmem:[#allocation7 + $0xe0] sm:$0xff] %v233
    %266 = vst [vmem:[#allocation7 + $0xe8] sm:$0xff] %v234
    %267 = vst [vmem:[#allocation7 + $0xf0] sm:$0xff] %v235
    %268 = vst [vmem:[#allocation7 + $0xf8] sm:$0xff] %v236
    // Predicated region
    $region18: #{tpu_custom_call.1} parent=1 // pred_check
      _
    $region19: #{tpu_custom_call.1} parent=1 // pred_check_branch
      %270 = sbr.rel (0) target = $region21
    $region20: #{tpu_custom_call.1} parent=1 // pred_region
      %272 = vsyncadd [#allocation4], 0
      %s273 = sshll.u32 [#allocation7], 4
      %s274 = int_to_ptr.vmem [resolvable:$true] %s273
      %s275 = sshll.u32 %s2, 4
      %s276 = int_to_ptr.hbm [resolvable:$true] %s275
      %281 = dma.vmem_to_hbm [thread:$0]  %s274, 4096, %s276, [#allocation4], 128, 128, 8
    $region21: #{tpu_custom_call.1} parent=1 // pred_fallthru
      _
    // Predicated region
    $region22: #{tpu_custom_call.1} parent=1 // pred_check
      _
    $region23: #{tpu_custom_call.1} parent=1 // pred_check_branch
      %283 = sbr.rel (0) target = $region25
    $region24: #{tpu_custom_call.1} parent=1 // pred_region
      %285 = dma.done [#allocation4], 4096
    $region25: #{tpu_custom_call.1} parent=1 // pred_fallthru
      _
    %286 = vsyncpa [#allocation3], 1
    %287 = vsyncpa [#allocation6], 1
    %288 = vsyncpa [#allocation4], 1

</llo_original>
